<compile_context>
chip_gen: v5e
topology: v5e:2x2
jax: 0.10.0
libtpu: 0.0.40
codegen_flags: <defaults>
</compile_context>

<pallas_src>
import functools
import math

import numpy as np

import jax
import jax.numpy as jnp
from jax.experimental import pallas as pl
from jax.experimental.pallas import tpu as pltpu


# ----------------------------- linear (Conv1D) kernels ----------------------


def _linear_kernel_accum_out(x_ref, w_ref, b_ref, o_ref):
    """y = x @ W + b, K-tiled.  f32 output block is resident across the K axis,
    so accumulate directly into it (no scratch).  bf16 MXU operands."""
    k = pl.program_id(2)

    @pl.when(k == 0)
    def _():
        o_ref[...] = jnp.zeros_like(o_ref)

    o_ref[...] += jnp.dot(
        x_ref[...].astype(jnp.bfloat16),
        w_ref[...].astype(jnp.bfloat16),
        preferred_element_type=jnp.float32,
    )

    @pl.when(k == pl.num_programs(2) - 1)
    def _():
        o_ref[...] += b_ref[...].astype(jnp.float32)


def _linear_kernel_scratch(x_ref, w_ref, b_ref, o_ref, acc_ref):
    """Same matmul but with an f32 VMEM accumulator, for non-f32 outputs."""
    k = pl.program_id(2)

    @pl.when(k == 0)
    def _():
        acc_ref[...] = jnp.zeros_like(acc_ref)

    acc_ref[...] += jnp.dot(
        x_ref[...].astype(jnp.bfloat16),
        w_ref[...].astype(jnp.bfloat16),
        preferred_element_type=jnp.float32,
    )

    @pl.when(k == pl.num_programs(2) - 1)
    def _():
        o_ref[...] = (acc_ref[...] + b_ref[...].astype(jnp.float32)).astype(o_ref.dtype)


# ----------------------------- attention kernel ----------------------------


def _attn_kernel(qkv_ref, o_ref, acc_ref, *, n_head, scale, tq):
    """Grid = (B, S // tq).  One batch element's full (S, 3E) fused qkv block is
    resident across the q-tile axis; each step computes tq query rows for all
    heads and performs a single lane-dense (1, tq, E) merged-head store.

    qkv_ref: (1, S, 3E) fused c_attn activation (bf16).
    o_ref:   (1, tq, E) merged-head output (bf16).
    acc_ref: (tq, E) f32 VMEM scratch — heads write lane slices here so the
             output store is one full-width write.
    """
    S = qkv_ref.shape[1]
    E = qkv_ref.shape[2] // 3
    D = E // n_head

    qi = pl.program_id(1)
    q_start = pl.multiple_of(qi * tq, tq)

    # Causal mask for this q tile, regenerated in-kernel (== the registered
    # tril `bias` buffer sliced to [q_rows, :S]); saves the (S,S) mask DMA.
    row = q_start + jax.lax.broadcasted_iota(jnp.int32, (tq, S), 0)
    col = jax.lax.broadcasted_iota(jnp.int32, (tq, S), 1)
    causal = row >= col

    inv_sqrt_d = jnp.float32(1.0 / math.sqrt(D))

    # TODO(synk): static unroll over heads; use a grouped loop (128-lane-aligned
    # slices) for GPT-2-sized D=64 / n_head=12.
    for h in range(n_head):
        q = qkv_ref[0, pl.ds(q_start, tq), h * D:(h + 1) * D]                 # (tq, D)
        k = qkv_ref[0, :, E + h * D:E + (h + 1) * D]                          # (S, D)
        v = qkv_ref[0, :, 2 * E + h * D:2 * E + (h + 1) * D]                  # (S, D)

        # scores = q @ k^T on the MXU in bf16, accumulated in f32.
        s = jax.lax.dot_general(
            q.astype(jnp.bfloat16),
            k.astype(jnp.bfloat16),
            (((1,), (1,)), ((), ())),
            preferred_element_type=jnp.float32,
        )                                                                     # (tq, S)
        if scale:
            s = s * inv_sqrt_d

        # w*b - 10000*(1-b) with b in {0,1}  ==  where(b, w, -10000.0)
        s = jnp.where(causal, s, jnp.float32(-10000.0))

        # softmax(dim=-1) in f32; 1/sum folded into the (tq, D) output via EUP.
        s = s - jnp.max(s, axis=-1, keepdims=True)
        e = jnp.exp(s)
        denom = jnp.sum(e, axis=-1, keepdims=True)                            # (tq, 1)
        pv = jnp.dot(
            e.astype(jnp.bfloat16),
            v.astype(jnp.bfloat16),
            preferred_element_type=jnp.float32,
        )                                                                     # (tq, D)

        # TODO(synk): attn_dropout / resid_dropout are identity (eval mode).
        acc_ref[:, h * D:(h + 1) * D] = pv * pl.reciprocal(denom, approx=True)

    # Single lane-dense store of the merged-head tile.
    o_ref[0, :, :] = acc_ref[...].astype(o_ref.dtype)


# ----------------------------- wrappers -----------------------------------


def _pick_tile(dim, pref, align):
    """Largest divisor of `dim` that is <= pref and a multiple of `align`;
    falls back to the full extent (always a legal block size)."""
    pref = max(align, min(pref, dim))
    t = (pref // align) * align
    while t >= align:
        if dim % t == 0:
            return t
        t -= align
    # TODO(synk): pad/mask ragged dims instead of a full-extent fallback if a
    # shape ever makes this block exceed the VMEM budget.
    return dim


def pallas_linear(x, w, b, *, out_dtype=None,
                  tm_pref=512, tn_pref=512, tk_pref=512,
                  vmem_budget_bytes=20 * 1024 * 1024):
    """x: (M, K), w: (K, N), b: (N,) -> (M, N).  Tiled, pipelined, bf16 MXU
    operands with f32 accumulation."""
    M, K = x.shape
    N = w.shape[1]
    out_dtype = np.dtype(x.dtype) if out_dtype is None else np.dtype(out_dtype)
    use_scratch = out_dtype != np.dtype(np.float32)

    def pick(tm_p, tn_p, tk_p):
        return (_pick_tile(M, tm_p, 8),
                _pick_tile(N, tn_p, 128),
                _pick_tile(K, tk_p, 128))

    def est_bytes(tm, tn, tk):
        total = 2 * tm * tk * np.dtype(x.dtype).itemsize       # x (double-buffered)
        total += 2 * tk * tn * np.dtype(w.dtype).itemsize      # w (double-buffered)
        total += 2 * tm * tn * out_dtype.itemsize              # out (double-buffered)
        total += 2 * tn * np.dtype(b.dtype).itemsize           # bias
        if use_scratch:
            total += tm * tn * 4                                # f32 accumulator
        return total

    tm_p, tn_p, tk_p = tm_pref, tn_pref, tk_pref
    tm, tn, tk = pick(tm_p, tn_p, tk_p)
    # Shrink preferences until the double-buffered working set fits the budget.
    while est_bytes(tm, tn, tk) > vmem_budget_bytes and max(tm_p, tn_p, tk_p) > 128:
        tm_p = max(128, tm_p // 2)
        tn_p = max(128, tn_p // 2)
        tk_p = max(128, tk_p // 2)
        tm, tn, tk = pick(tm_p, tn_p, tk_p)

    grid = (M // tm, N // tn, K // tk)

    if use_scratch:
        kernel = _linear_kernel_scratch
        scratch_shapes = [pltpu.VMEM((tm, tn), jnp.float32)]
    else:
        kernel = _linear_kernel_accum_out
        scratch_shapes = []

    return pl.pallas_call(
        kernel,
        out_shape=jax.ShapeDtypeStruct((M, N), out_dtype),
        grid=grid,
        in_specs=[
            pl.BlockSpec((tm, tk), lambda i, j, k: (i, k)),
            pl.BlockSpec((tk, tn), lambda i, j, k: (k, j)),
            pl.BlockSpec((1, tn), lambda i, j, k: (0, j)),
        ],
        out_specs=pl.BlockSpec((tm, tn), lambda i, j, k: (i, j)),
        scratch_shapes=scratch_shapes,
        compiler_params=pltpu.CompilerParams(
            dimension_semantics=("parallel", "parallel", "arbitrary"),
            vmem_limit_bytes=32 * 1024 * 1024,
        ),
    )(x, w, b.reshape(1, N))


def pallas_attn(qkv, n_head, scale=True, tq_pref=256):
    """qkv: (B, S, 3E) fused projection -> (B, S, E) merged attention output."""
    B, S, E3 = qkv.shape
    E = E3 // 3
    tq = _pick_tile(S, tq_pref, 8)

    kernel = functools.partial(_attn_kernel, n_head=n_head, scale=scale, tq=tq)
    return pl.pallas_call(
        kernel,
        out_shape=jax.ShapeDtypeStruct((B, S, E), qkv.dtype),
        grid=(B, S // tq),
        in_specs=[pl.BlockSpec((1, S, E3), lambda b, qi: (b, 0, 0))],
        out_specs=pl.BlockSpec((1, tq, E), lambda b, qi: (b, qi, 0)),
        scratch_shapes=[pltpu.VMEM((tq, E), jnp.float32)],
        compiler_params=pltpu.CompilerParams(
            dimension_semantics=("parallel", "parallel"),
            vmem_limit_bytes=32 * 1024 * 1024,
        ),
    )(qkv)


def magic_attention_forward(x, params, n_head, scale=True):
    """MagicModule(Attention).forward(x): returns the attention block output.

    Intermediates (qkv, merged-head activation) are kept in bf16 between the
    pallas_calls to halve HBM traffic; matmuls accumulate in f32 and the final
    c_proj output is f32.
    """
    B, S, E = x.shape

    # c_attn: Conv1D -> (B, S, 3E), stored bf16.
    qkv = pallas_linear(
        x.reshape(B * S, E), params["c_attn_w"], params["c_attn_b"],
        out_dtype=jnp.bfloat16,
    ).reshape(B, S, 3 * E)

    # split_heads + _attn + merge_heads fused in one Pallas kernel (bf16 out).
    a = pallas_attn(qkv, n_head, scale=scale)

    # c_proj (resid_dropout is identity in eval mode); f32 output.
    out = pallas_linear(
        a.reshape(B * S, E), params["c_proj_w"], params["c_proj_b"],
        out_dtype=jnp.float32,
    )
    return out.reshape(B, S, E)


def ref_forward(x, params, n_head, scale=True):
    """Pure-jnp f32 reference of the same forward, for verification."""
    B, S, E = x.shape
    D = E // n_head
    qkv = x @ params["c_attn_w"] + params["c_attn_b"]
    q, k, v = jnp.split(qkv, 3, axis=-1)
    q = q.reshape(B, S, n_head, D).transpose(0, 2, 1, 3)
    k = k.reshape(B, S, n_head, D).transpose(0, 2, 3, 1)
    v = v.reshape(B, S, n_head, D).transpose(0, 2, 1, 3)
    w = jnp.einsum("bhqd,bhdk->bhqk", q, k)
    if scale:
        w = w / math.sqrt(D)
    b = params["bias"][:S, :S][None, None]
    w = w * b - 10000.0 * (1.0 - b)
    w = jax.nn.softmax(w, axis=-1)
    a = jnp.einsum("bhqk,bhkd->bhqd", w, v)
    a = a.transpose(0, 2, 1, 3).reshape(B, S, E)
    return a @ params["c_proj_w"] + params["c_proj_b"]


# ----------------------------- main ----------------------------------------


if __name__ == "__main__":
    B, S, E, n_head = 2, 8, 32, 4
    n_ctx = 16  # registered causal-bias buffer size (>= S)

    key = jax.random.PRNGKey(0)
    kx, kw1, kw2 = jax.random.split(key, 3)

    # Deterministic synthetic parameters (GPT-2 style init: N(0, 0.02), zero bias).
    params = {
        "c_attn_w": (0.02 * jax.random.normal(kw1, (E, 3 * E))).astype(jnp.float32),
        "c_attn_b": jnp.zeros((3 * E,), jnp.float32),
        "c_proj_w": (0.02 * jax.random.normal(kw2, (E, E))).astype(jnp.float32),
        "c_proj_b": jnp.zeros((E,), jnp.float32),
        "bias": jnp.tril(jnp.ones((n_ctx, n_ctx), jnp.float32)),  # causal mask buffer
    }

    x = jax.random.normal(kx, (B, S, E), dtype=jnp.float32)

    out = magic_attention_forward(x, params, n_head, scale=True)
    out = jax.block_until_ready(out)

    ref = ref_forward(x, params, n_head, scale=True)
    assert out.shape == (B, S, E)
    # bf16 MXU operands / bf16 intermediates / approx reciprocal -> looser tolerance.
    assert jnp.allclose(out, ref, atol=2e-3, rtol=2e-2), "mismatch vs reference"

    print("KERNEL_OK")
</pallas_src>

<mosaic_0001>
module attributes {stable_mosaic.version = 11 : i64} {
  func.func @_linear_kernel_scratch(%arg0: i32, %arg1: i32, %arg2: i32, %arg3: memref<16x32xf32, #tpu.memory_space<vmem>>, %arg4: memref<32x96xf32, #tpu.memory_space<vmem>>, %arg5: memref<1x96xf32, #tpu.memory_space<vmem>>, %arg6: memref<16x96xbf16, #tpu.memory_space<vmem>>, %arg7: memref<16x96xf32, #tpu.memory_space<vmem>>) attributes {dimension_semantics = [#tpu.dimension_semantics<parallel>, #tpu.dimension_semantics<parallel>, #tpu.dimension_semantics<arbitrary>], iteration_bounds = array<i64: 1, 1, 1>, scalar_prefetch = 0 : i64, scratch_operands = 1 : i64, tpu.core_type = #tpu.core_type<tc>, window_params = [{transform_indices = @transform_0, window_bounds = array<i64: 16, 32>}, {transform_indices = @transform_1, window_bounds = array<i64: 32, 96>}, {transform_indices = @transform_2, window_bounds = array<i64: 1, 96>}, {transform_indices = @transform_3, window_bounds = array<i64: 16, 96>}]} {
    %c0_i32 = arith.constant 0 : i32
    %0 = arith.cmpi eq, %arg2, %c0_i32 : i32
    %1 = arith.extui %0 : i1 to i32
    %c0_i32_0 = arith.constant 0 : i32
    %2 = arith.cmpi ne, %1, %c0_i32_0 : i32
    scf.if %2 {
      %cst_10 = arith.constant 0.000000e+00 : f32
      %14 = vector.broadcast %cst_10 : f32 to vector<16x96xf32>
      %c0_11 = arith.constant 0 : index
      %c0_12 = arith.constant 0 : index
      %15 = vector.load %arg7[%c0_11, %c0_12] : memref<16x96xf32, #tpu.memory_space<vmem>>, vector<16x96xf32>
      tpu.vector_store %arg7[%c0_11, %c0_12], %14 {strides = array<i32>} : memref<16x96xf32, #tpu.memory_space<vmem>>, vector<16x96xf32>,
    } else {
    }
    %c0 = arith.constant 0 : index
    %c0_1 = arith.constant 0 : index
    %3 = vector.load %arg7[%c0, %c0_1] : memref<16x96xf32, #tpu.memory_space<vmem>>, vector<16x96xf32>
    %c0_2 = arith.constant 0 : index
    %c0_3 = arith.constant 0 : index
    %4 = vector.load %arg3[%c0_2, %c0_3] : memref<16x32xf32, #tpu.memory_space<vmem>>, vector<16x32xf32>
    %5 = arith.truncf %4 : vector<16x32xf32> to vector<16x32xbf16>
    %c0_4 = arith.constant 0 : index
    %c0_5 = arith.constant 0 : index
    %6 = vector.load %arg4[%c0_4, %c0_5] : memref<32x96xf32, #tpu.memory_space<vmem>>, vector<32x96xf32>
    %7 = arith.truncf %6 : vector<32x96xf32> to vector<32x96xbf16>
    %cst = arith.constant dense<0.000000e+00> : vector<16x96xf32>
    %8 = tpu.matmul %5, %7, %cst {dimension_numbers = #tpu.dot_dimension_numbers<[1], [0], [0], [1], [0, 0, 1, 1], [], []>} : vector<16x32xbf16>, vector<32x96xbf16>, vector<16x96xf32> -> vector<16x96xf32>
    %9 = arith.addf %3, %8 : vector<16x96xf32>
    %c0_6 = arith.constant 0 : index
    %c0_7 = arith.constant 0 : index
    %10 = vector.load %arg7[%c0_6, %c0_7] : memref<16x96xf32, #tpu.memory_space<vmem>>, vector<16x96xf32>
    tpu.vector_store %arg7[%c0_6, %c0_7], %9 {strides = array<i32>} : memref<16x96xf32, #tpu.memory_space<vmem>>, vector<16x96xf32>,
    %c0_i32_8 = arith.constant 0 : i32
    %11 = arith.cmpi eq, %arg2, %c0_i32_8 : i32
    %12 = arith.extui %11 : i1 to i32
    %c0_i32_9 = arith.constant 0 : i32
    %13 = arith.cmpi ne, %12, %c0_i32_9 : i32
    scf.if %13 {
      %c0_10 = arith.constant 0 : index
      %c0_11 = arith.constant 0 : index
      %14 = vector.load %arg7[%c0_10, %c0_11] : memref<16x96xf32, #tpu.memory_space<vmem>>, vector<16x96xf32>
      %c0_12 = arith.constant 0 : index
      %c0_13 = arith.constant 0 : index
      %15 = vector.load %arg5[%c0_12, %c0_13] : memref<1x96xf32, #tpu.memory_space<vmem>>, vector<1x96xf32>
      %16 = vector.broadcast %15 : vector<1x96xf32> to vector<16x96xf32>
      %17 = arith.addf %14, %16 : vector<16x96xf32>
      %18 = arith.truncf %17 : vector<16x96xf32> to vector<16x96xbf16>
      %c0_14 = arith.constant 0 : index
      %c0_15 = arith.constant 0 : index
      %19 = vector.load %arg6[%c0_14, %c0_15] : memref<16x96xbf16, #tpu.memory_space<vmem>>, vector<16x96xbf16>
      tpu.vector_store %arg6[%c0_14, %c0_15], %18 {strides = array<i32>} : memref<16x96xbf16, #tpu.memory_space<vmem>>, vector<16x96xbf16>,
    } else {
    }
    return
  }
  func.func @transform_0(%arg0: i32, %arg1: i32, %arg2: i32) -> (i32, i32) {
    %c0_i32 = arith.constant 0 : i32
    return %arg0, %arg2 : i32, i32
  }
  func.func @transform_1(%arg0: i32, %arg1: i32, %arg2: i32) -> (i32, i32) {
    %c0_i32 = arith.constant 0 : i32
    return %arg2, %arg1 : i32, i32
  }
  func.func @transform_2(%arg0: i32, %arg1: i32, %arg2: i32) -> (i32, i32) {
    %c0_i32 = arith.constant 0 : i32
    %c0_i32_0 = arith.constant 0 : i32
    return %c0_i32, %arg1 : i32, i32
  }
  func.func @transform_3(%arg0: i32, %arg1: i32, %arg2: i32) -> (i32, i32) {
    %c0_i32 = arith.constant 0 : i32
    return %arg0, %arg1 : i32, i32
  }
}

</mosaic_0001>

<llo_original>
// kernel: tpu_custom_call.1
$region0: #{tpu_custom_call.1}
  #allocation0 [shape = 'u32[]', space=smem, size = 0x4, offset = 0x4, fixed_abs, tag = 'smem constant byte address 0x4 - core index']
  #allocation1 [shape = 'u32[72,128]{1,0:T(1,128)}', space=vmem, size = 0x9000, scoped, tag = 'internal scratch']
  #allocation2 [shape = 'f32[16,96]{1,0:T(8,128)}', space=vmem, size = 0x2000, scoped, tag = 'scratch operand']
  %s0 = inlined_call_operand.hbm [shape: f32[16,32], index: 0, kind: input, shape index: {}]
  %s1 = inlined_call_operand.hbm [shape: f32[32,96], index: 1, kind: input, shape index: {}]
  %s2 = inlined_call_operand.vmem [shape: f32[1,96], index: 2, kind: input, shape index: {}]
  %s3 = inlined_call_operand.hbm [shape: bf16[16,96], index: 3, kind: output, shape index: {}]
  %s4 = sld [smem:[#allocation0]]
  $region38: #{tpu_custom_call.1} parent=0
    _
  %s6 = ssub.s32 1, %s4
  %s7 = scalar_select 0, %s6, %s4
  $region1: #{tpu_custom_call.1} parent=0
    #allocation3 [shape = 'u8[8192]{0}', space=vmem, size = 0x2000, scoped, tag = 'input window, operand 0, single buffered']
    #allocation4 [shape = 's32[1]{0}', space=sflag, size = 0x4, scoped, tag = 'scoped memory for tpu_custom_call.1']
    #allocation5 [shape = 's32[1]{0}', space=sflag, size = 0x4, scoped, tag = 'scoped memory for tpu_custom_call.1']
    #allocation6 [shape = 'u8[16384]{0}', space=vmem, size = 0x4000, scoped, tag = 'input window, operand 1, single buffered']
    #allocation7 [shape = 's32[1]{0}', space=sflag, size = 0x4, scoped, tag = 'scoped memory for tpu_custom_call.1']
    #allocation8 [shape = 'u8[4096]{0}', space=vmem, size = 0x1000, scoped, tag = 'output window, operand 0, single buffered']
    %8 = vsyncpa [#allocation4], 0
    %9 = vsyncpa [#allocation7], 0
    %10 = vsyncpa [#allocation5], 0
    // Predicated region
    $region2: #{tpu_custom_call.1} parent=1 // pred_check
      _
    $region3: #{tpu_custom_call.1} parent=1 // pred_check_branch
      %12 = sbr.rel (0) target = $region5
    $region4: #{tpu_custom_call.1} parent=1 // pred_region
      %14 = vsyncadd [#allocation4], 0
      %s15 = sshll.u32 %s0, 4
      %s16 = int_to_ptr.hbm [resolvable:$true] %s15
      %s17 = sshll.u32 [#allocation3], 4
      %s18 = int_to_ptr.vmem [resolvable:$true] %s17
      %23 = dma.hbm_to_vmem [thread:$0]  %s16, 256, %s18, [#allocation4], 128, 128, 8
    $region5: #{tpu_custom_call.1} parent=1 // pred_fallthru
      _
    // Predicated region
    $region6: #{tpu_custom_call.1} parent=1 // pred_check
      _
    $region7: #{tpu_custom_call.1} parent=1 // pred_check_branch
      %25 = sbr.rel (0) target = $region9
    $region8: #{tpu_custom_call.1} parent=1 // pred_region
      %27 = vsyncadd [#allocation7], 0
      %s28 = sshll.u32 %s1, 4
      %s29 = int_to_ptr.hbm [resolvable:$true] %s28
      %s30 = sshll.u32 [#allocation6], 4
      %s31 = int_to_ptr.vmem [resolvable:$true] %s30
      %36 = dma.hbm_to_vmem [thread:$0]  %s29, 512, %s31, [#allocation7], 128, 128, 8
    $region9: #{tpu_custom_call.1} parent=1 // pred_fallthru
      _
    // Predicated region
    $region10: #{tpu_custom_call.1} parent=1 // pred_check
      _
    $region11: #{tpu_custom_call.1} parent=1 // pred_check_branch
      %38 = sbr.rel (0) target = $region13
    $region12: #{tpu_custom_call.1} parent=1 // pred_region
      _
    $region13: #{tpu_custom_call.1} parent=1 // pred_fallthru
      _
    // Predicated region
    $region14: #{tpu_custom_call.1} parent=1 // pred_check
      _
    $region15: #{tpu_custom_call.1} parent=1 // pred_check_branch
      %40 = sbr.rel (0) target = $region17
    $region16: #{tpu_custom_call.1} parent=1 // pred_region
      %42 = dma.done [#allocation4], 256
    $region17: #{tpu_custom_call.1} parent=1 // pred_fallthru
      _
    // Predicated region
    $region18: #{tpu_custom_call.1} parent=1 // pred_check
      _
    $region19: #{tpu_custom_call.1} parent=1 // pred_check_branch
      %44 = sbr.rel (0) target = $region21
    $region20: #{tpu_custom_call.1} parent=1 // pred_region
      %46 = dma.done [#allocation7], 512
    $region21: #{tpu_custom_call.1} parent=1 // pred_fallthru
      _
    %p48 = scmp.eq.s32.totalorder 0, 0
    // Predicated region
    $region22: #{tpu_custom_call.1} parent=1 // pred_check
      %p49 = pneg %p48
    $region23: #{tpu_custom_call.1} parent=1 // pred_check_branch
      %51 = sbr.rel (%p49) target = $region25
    $region24: #{tpu_custom_call.1} parent=1 // pred_region
      %vm52 = vcmask 785408
      %53 = vst.msk [vmem:[#allocation2] sm:$0xff] %vm52, 0.0
      %54 = vst.msk [vmem:[#allocation2 + $0x8] sm:$0xff] %vm52, 0.0
    $region25: #{tpu_custom_call.1} parent=1 // pred_fallthru
      _
    %v55 = vld [vmem:[#allocation2] sm:$0xff]
    %v56 = vld [vmem:[#allocation2 + $0x8] sm:$0xff]
    %v57 = vld [vmem:[#allocation3] sm:$0xff]
    %v58 = vld [vmem:[#allocation3 + $0x8] sm:$0xff]
    %v59 = vpack.c.bf16 %v58, %v57
    %v60 = vld [vmem:[#allocation6] sm:$0xff]
    %v61 = vld [vmem:[#allocation6 + $0x8] sm:$0xff]
    %v62 = vld [vmem:[#allocation6 + $0x10] sm:$0xff]
    %v63 = vld [vmem:[#allocation6 + $0x18] sm:$0xff]
    %v64 = vpack.c.bf16 %v61, %v60
    %v65 = vpack.c.bf16 %v63, %v62
    %vm66 = vcmask 261120
    %v68 = vsel %vm66, %v59, 0
    %70 = vmatpush.bf16.msra.mxu0 0
    %71 = vmatpush.bf16.msra.mxu0 0
    %72 = vmatpush.bf16.msra.mxu0 0
    %73 = vmatpush.bf16.msra.mxu0 0
    %74 = vmatpush.bf16.msra.mxu0 0
    %75 = vmatpush.bf16.msra.mxu0 0
    %76 = vmatpush.bf16.msra.mxu0 %v65
    %77 = vmatpush.bf16.msra.mxu0 %v64
    %78 = vmatmul.bf16.gmra.mxu0 %v68
    %v79 = vpop.f32.mrf.mxu0
    %v80 = vadd.f32 0.0, %v79
    %v81 = vpop.f32.mrf.mxu0
    %v82 = vadd.f32 0.0, %v81
    %83 = vdwg.mxu0
    %v84 = vadd.f32 %v55, %v80
    %v85 = vadd.f32 %v56, %v82
    %vm86 = vcmask 785408
    %87 = vst.msk [vmem:[#allocation2] sm:$0xff] %vm86, %v84
    %88 = vst.msk [vmem:[#allocation2 + $0x8] sm:$0xff] %vm86, %v85
    // Predicated region
    $region26: #{tpu_custom_call.1} parent=1 // pred_check
      %p89 = pneg %p48
    $region27: #{tpu_custom_call.1} parent=1 // pred_check_branch
      %91 = sbr.rel (%p89) target = $region29
    $region28: #{tpu_custom_call.1} parent=1 // pred_region
      %v92 = vld [vmem:[#allocation2] sm:$0xff]
      %v93 = vld [vmem:[#allocation2 + $0x8] sm:$0xff]
      %v94 = vld [vmem:[%s2] sm:$0x1]
      %v96 = vperm.slane %v94, 0
      %v98 = vadd.f32 %v92, %v96
      %v99 = vadd.f32 %v93, %v96
      %v100 = vpack.c.bf16 %v98, %v98
      %v101 = vpack.c.bf16 %v99, %v99
      %vm102 = vcmask 781312
      %103 = vst.msk [vmem:[#allocation8] sm:$0xf] %vm102, %v100
      %104 = vst.msk [vmem:[#allocation8 + $0x4] sm:$0xf] %vm102, %v101
    $region29: #{tpu_custom_call.1} parent=1 // pred_fallthru
      _
    // Predicated region
    $region30: #{tpu_custom_call.1} parent=1 // pred_check
      _
    $region31: #{tpu_custom_call.1} parent=1 // pred_check_branch
      %106 = sbr.rel (0) target = $region33
    $region32: #{tpu_custom_call.1} parent=1 // pred_region
      %108 = vsyncadd [#allocation5], 0
      %s109 = sshll.u32 [#allocation8], 4
      %s110 = int_to_ptr.vmem [resolvable:$true] %s109
      %s111 = sshll.u32 %s3, 4
      %s112 = int_to_ptr.hbm [resolvable:$true] %s111
      %117 = dma.vmem_to_hbm [thread:$0]  %s110, 128, %s112, [#allocation5], 64, 64, 4
    $region33: #{tpu_custom_call.1} parent=1 // pred_fallthru
      _
    // Predicated region
    $region34: #{tpu_custom_call.1} parent=1 // pred_check
      _
    $region35: #{tpu_custom_call.1} parent=1 // pred_check_branch
      %119 = sbr.rel (0) target = $region37
    $region36: #{tpu_custom_call.1} parent=1 // pred_region
      %121 = dma.done [#allocation5], 128
    $region37: #{tpu_custom_call.1} parent=1 // pred_fallthru
      _
    %122 = vsyncpa [#allocation4], 1
    %123 = vsyncpa [#allocation7], 1
    %124 = vsyncpa [#allocation5], 1

</llo_original>
